<compile_context>
chip_gen: v7x
topology: tpu7x:2x2x1
jax: 0.10.0
libtpu: 0.0.40
codegen_flags: <defaults>
</compile_context>

<pallas_src>
import jax
import jax.numpy as jnp
from jax.experimental import pallas as pl
from jax.experimental.pallas import tpu as pltpu

# ---------------- scaled-down config (stand-ins for the real dims) ----------------
NUM_CLASSES = 3
HIDDEN = 32                        # stand-in for 768
AUDIO_SEQ = 10                     # stand-in for 170
AUDIO_FRAME = 40                   # raw-audio samples per "frame" for the stub backbone
AUDIO_FEAT = AUDIO_SEQ * HIDDEN    # stand-in for 170 * 768 (flattened wav2vec2 features)
SUB_CLS_DIM = NUM_CLASSES + 2      # width of each sub-model classification head
FUSED_DIM = AUDIO_FEAT + HIDDEN + 2 * NUM_CLASSES + 4   # matches 170*768 + 768 + 2C + 4
HIDDEN_LAYERS = [512, 128, 32]     # module defaults
OUT_DIM = NUM_CLASSES + 1
VOCAB = 100
TEXT_SEQ = 8
BATCH = 2

# padded kernel dims (lane-dense / sublane-full)
SUB_PAD = 128                      # padded audio-classification width
OUT_PAD = 128                      # padded output width
B_PAD = 8                          # padded batch (full f32 sublane count)
NEG = -1e30                        # suppresses padded softmax columns exactly


# ------------------------------- Pallas kernel -------------------------------------
def fusion_kernel(af_ref, tx_ref, w_af_ref, pool_w_ref, w_ac_ref, w_tf_ref,
                  bias_ref, out_ref):
    f32 = jnp.float32

    bias = bias_ref[...]                       # [3, 128] f32
    b_audio = bias[0:1, :]                     # [1, SUB_PAD]   (-1e30 in padding)
    pool_b = bias[1:2, :HIDDEN]                # [1, HIDDEN]
    b_total = bias[2:3, :]                     # [1, OUT_PAD]   (-1e30 in padding)

    # ---- single MXU pass for the big activation: af @ [W_audio | W_fused_af]
    af = af_ref[...]                                                   # bf16 [B, AUDIO_FEAT]
    af_out = jnp.dot(af, w_af_ref[...], preferred_element_type=f32)    # [B, SUB_PAD+OUT_PAD]
    a_logits = af_out[:, :SUB_PAD] + b_audio                           # audio cls logits
    fused = af_out[:, SUB_PAD:]                                        # af part of fused logits

    # ---- audio branch softmax (folded lm_head -> cls_head), dim=1
    a_logits = a_logits - jnp.max(a_logits, axis=1, keepdims=True)
    ea = jnp.exp(a_logits)
    ac = ea * pl.reciprocal(jnp.sum(ea, axis=1, keepdims=True), approx=True)   # [B, SUB_PAD]

    # ---- text branch: pooler (dense + tanh on CLS token); dropout = identity (eval)
    tf = jnp.tanh(
        jnp.dot(tx_ref[...], pool_w_ref[...], preferred_element_type=f32) + pool_b
    )                                                                   # f32 [B, HIDDEN]

    # ---- fused head: concat + mlp_head + cls_head folded into three matmuls + bias
    logits = (
        fused
        + jnp.dot(ac, w_ac_ref[...], preferred_element_type=f32)
        + jnp.dot(tf, w_tf_ref[...], preferred_element_type=f32)
        + b_total
    )
    logits = logits - jnp.max(logits, axis=1, keepdims=True)
    e = jnp.exp(logits)
    out_ref[...] = e * pl.reciprocal(jnp.sum(e, axis=1, keepdims=True), approx=True)


def fusion_forward(audio_features, text_cls, folded):
    w_af_comb, pool_w_bf, w_ac, w_tf, bias = folded
    b = audio_features.shape[0]
    # pad batch to full sublane count, cast matmul activations to bf16
    af = jnp.zeros((B_PAD, AUDIO_FEAT), jnp.bfloat16).at[:b].set(
        audio_features.astype(jnp.bfloat16))
    tx = jnp.zeros((B_PAD, HIDDEN), jnp.bfloat16).at[:b].set(
        text_cls.astype(jnp.bfloat16))

    vmem = pl.BlockSpec(memory_space=pltpu.MemorySpace.VMEM)
    out = pl.pallas_call(
        fusion_kernel,
        out_shape=jax.ShapeDtypeStruct((B_PAD, OUT_PAD), jnp.float32),
        in_specs=[vmem] * 7,
        out_specs=vmem,
    )(af, tx, w_af_comb, pool_w_bf, w_ac, w_tf, bias)
    return out[:b, :OUT_DIM]


# ------------------------------ param construction ---------------------------------
def make_linear(key, fan_in, fan_out):
    kw, kb = jax.random.split(key)
    scale = 1.0 / jnp.sqrt(jnp.float32(fan_in))
    w = jax.random.normal(kw, (fan_in, fan_out), jnp.float32) * scale
    b = jax.random.normal(kb, (1, fan_out), jnp.float32) * scale
    return w, b


def build_params(key):
    """Original (unfolded) FusionModel parameters."""
    ks = jax.random.split(key, 8)
    lm_w, lm_b = make_linear(ks[0], AUDIO_FEAT, HIDDEN)           # audio lm_head
    acls_w, acls_b = make_linear(ks[1], HIDDEN, SUB_CLS_DIM)      # audio cls_head
    pool_w, pool_b = make_linear(ks[2], HIDDEN, HIDDEN)           # text pooler
    txt_w, txt_b = make_linear(ks[3], HIDDEN, SUB_CLS_DIM)        # text classifier
    w0, b0 = make_linear(ks[4], FUSED_DIM, HIDDEN_LAYERS[0])      # mlp_head[0]
    w1, b1 = make_linear(ks[5], HIDDEN_LAYERS[0], HIDDEN_LAYERS[1])
    w2, b2 = make_linear(ks[6], HIDDEN_LAYERS[1], HIDDEN_LAYERS[2])
    wc, bc = make_linear(ks[7], HIDDEN_LAYERS[2], OUT_DIM)        # cls_head
    return (lm_w, lm_b, acls_w, acls_b, pool_w, pool_b, txt_w, txt_b,
            w0, b0, w1, b1, w2, b2, wc, bc)


def fold_params(params):
    """Exact f32 folding of all activation-free Linear chains + lane-dense padding."""
    (lm_w, lm_b, acls_w, acls_b, pool_w, pool_b, txt_w, txt_b,
     w0, b0, w1, b1, w2, b2, wc, bc) = params
    f32 = jnp.float32
    hp = lambda a, b: jnp.dot(a, b, precision=jax.lax.Precision.HIGHEST)

    # mlp_head -> cls_head chain (no activations): one weight / bias
    w_chain = hp(hp(hp(w0, w1), w2), wc)                    # [FUSED_DIM, OUT_DIM]
    b_chain = hp(hp(hp(b0, w1) + b1, w2) + b2, wc) + bc     # [1, OUT_DIM]
    s0 = AUDIO_FEAT
    s1 = s0 + SUB_CLS_DIM
    s2 = s1 + HIDDEN
    wa, wb, wc_part, wd = w_chain[:s0], w_chain[s0:s1], w_chain[s1:s2], w_chain[s2:]

    # audio lm_head -> cls_head fold
    w_audio = hp(lm_w, acls_w)                              # [AUDIO_FEAT, SUB_CLS_DIM]
    b_audio = hp(lm_b, acls_w) + acls_b                     # [1, SUB_CLS_DIM]

    # fold text classifier (tc = tf @ txt_w + txt_b) into the fused head
    w_tf = wc_part + hp(txt_w, wd)                          # [HIDDEN, OUT_DIM]
    b_total = hp(txt_b, wd) + b_chain                       # [1, OUT_DIM]

    # lane-dense padding; combine both af-consuming weights along N (one MXU pass)
    w_audio_p = jnp.zeros((AUDIO_FEAT, SUB_PAD), f32).at[:, :SUB_CLS_DIM].set(w_audio)
    wa_p = jnp.zeros((AUDIO_FEAT, OUT_PAD), f32).at[:, :OUT_DIM].set(wa)
    w_af_comb = jnp.concatenate([w_audio_p, wa_p], axis=1).astype(jnp.bfloat16)

    w_ac = jnp.zeros((SUB_PAD, OUT_PAD), f32).at[:SUB_CLS_DIM, :OUT_DIM].set(wb)
    w_tf_p = jnp.zeros((HIDDEN, OUT_PAD), f32).at[:, :OUT_DIM].set(w_tf)

    # pack the three remaining biases into a single [3, 128] f32 slab
    bias = jnp.full((3, 128), NEG, f32)
    bias = bias.at[0, :SUB_CLS_DIM].set(b_audio[0])         # -1e30 padding kills pad lanes
    bias = bias.at[1, :].set(0.0)
    bias = bias.at[1, :HIDDEN].set(pool_b[0])
    bias = bias.at[2, :OUT_DIM].set(b_total[0])

    return (w_af_comb, pool_w.astype(jnp.bfloat16), w_ac, w_tf_p, bias)


# --------------------------------- reference ----------------------------------------
def reference_forward(audio_features, text_cls, params):
    """Plain-JAX f32 mirror of the original (unfolded) PyTorch forward."""
    (lm_w, lm_b, acls_w, acls_b, pool_w, pool_b, txt_w, txt_b,
     w0, b0, w1, b1, w2, b2, wc, bc) = params
    hp = lambda a, b: jnp.dot(a, b, precision=jax.lax.Precision.HIGHEST)
    af = audio_features
    ac = jax.nn.softmax(hp(hp(af, lm_w) + lm_b, acls_w) + acls_b, axis=1)
    tf = jnp.tanh(hp(text_cls, pool_w) + pool_b)
    tc = hp(tf, txt_w) + txt_b                     # dropout = identity (eval)
    x = jnp.concatenate([af, ac, tf, tc], axis=1)
    x = hp(x, w0) + b0
    x = hp(x, w1) + b1
    x = hp(x, w2) + b2
    x = hp(x, wc) + bc
    return jax.nn.softmax(x, axis=1)


# ----------------------------------- main --------------------------------------------
if __name__ == "__main__":
    key = jax.random.PRNGKey(0)
    k_audio, k_text, k_w2v, k_emb, k_params = jax.random.split(key, 5)

    # raw inputs analogous to (text tokens, audio waveform)
    audio = jax.random.normal(k_audio, (BATCH, AUDIO_SEQ * AUDIO_FRAME), jnp.float32)
    text = jax.random.randint(k_text, (BATCH, TEXT_SEQ), 0, VOCAB)

    # ---- deterministic stand-in backbones (plain-JAX glue) ----
    # wav2vec2 stub: frame the waveform and project -> last_hidden_state [B, AUDIO_SEQ, HIDDEN]
    w2v_proj = jax.random.normal(k_w2v, (AUDIO_FRAME, HIDDEN), jnp.float32) * 0.1
    audio_hidden = jnp.tanh(audio.reshape(BATCH, AUDIO_SEQ, AUDIO_FRAME) @ w2v_proj)
    audio_features = audio_hidden.reshape(BATCH, AUDIO_FEAT)      # audio_model.flatten(...)

    # deberta stub: embedding lookup -> last_hidden_state; pooler uses the CLS token
    embed = jax.random.normal(k_emb, (VOCAB, HIDDEN), jnp.float32) * 0.1
    text_cls = embed[text][:, 0, :]                               # [B, HIDDEN]

    params = build_params(k_params)
    folded = fold_params(params)

    out = fusion_forward(audio_features, text_cls, folded)
    out = jax.block_until_ready(out)

    ref = reference_forward(audio_features, text_cls, params)
    assert out.shape == (BATCH, OUT_DIM)
    # folds are exact in f32; residual error comes from bf16 matmul operands and the
    # approximate EUP reciprocal, both well under the 5e-3 tolerance used here.
    assert jnp.allclose(jnp.sum(out, axis=1), 1.0, atol=5e-3)
    assert jnp.allclose(out, ref, atol=5e-3)

    print("KERNEL_OK")
</pallas_src>

<mosaic_0001>
module attributes {stable_mosaic.version = 11 : i64} {
  func.func @fusion_kernel(%arg0: memref<8x320xbf16, #tpu.memory_space<vmem>>, %arg1: memref<8x32xbf16, #tpu.memory_space<vmem>>, %arg2: memref<320x256xbf16, #tpu.memory_space<vmem>>, %arg3: memref<32x32xbf16, #tpu.memory_space<vmem>>, %arg4: memref<128x128xf32, #tpu.memory_space<vmem>>, %arg5: memref<32x128xf32, #tpu.memory_space<vmem>>, %arg6: memref<3x128xf32, #tpu.memory_space<vmem>>, %arg7: memref<8x128xf32, #tpu.memory_space<vmem>>) attributes {dimension_semantics = [], scalar_prefetch = 0 : i64, scratch_operands = 0 : i64, tpu.core_type = #tpu.core_type<tc>} {
    %c0 = arith.constant 0 : index
    %c0_0 = arith.constant 0 : index
    %0 = vector.load %arg6[%c0, %c0_0] : memref<3x128xf32, #tpu.memory_space<vmem>>, vector<3x128xf32>
    %1 = vector.extract_strided_slice %0 {offsets = [0, 0], sizes = [1, 128], strides = [1, 1]} : vector<3x128xf32> to vector<1x128xf32>
    %2 = vector.extract_strided_slice %0 {offsets = [1, 0], sizes = [1, 32], strides = [1, 1]} : vector<3x128xf32> to vector<1x32xf32>
    %3 = vector.extract_strided_slice %0 {offsets = [2, 0], sizes = [1, 128], strides = [1, 1]} : vector<3x128xf32> to vector<1x128xf32>
    %c0_1 = arith.constant 0 : index
    %c0_2 = arith.constant 0 : index
    %4 = vector.load %arg0[%c0_1, %c0_2] : memref<8x320xbf16, #tpu.memory_space<vmem>>, vector<8x320xbf16>
    %c0_3 = arith.constant 0 : index
    %c0_4 = arith.constant 0 : index
    %5 = vector.load %arg2[%c0_3, %c0_4] : memref<320x256xbf16, #tpu.memory_space<vmem>>, vector<320x256xbf16>
    %cst = arith.constant dense<0.000000e+00> : vector<8x256xf32>
    %6 = tpu.matmul %4, %5, %cst {dimension_numbers = #tpu.dot_dimension_numbers<[1], [0], [0], [1], [0, 0, 1, 1], [], []>} : vector<8x320xbf16>, vector<320x256xbf16>, vector<8x256xf32> -> vector<8x256xf32>
    %7 = vector.extract_strided_slice %6 {offsets = [0, 0], sizes = [8, 128], strides = [1, 1]} : vector<8x256xf32> to vector<8x128xf32>
    %8 = vector.broadcast %1 : vector<1x128xf32> to vector<8x128xf32>
    %9 = arith.addf %7, %8 : vector<8x128xf32>
    %10 = vector.extract_strided_slice %6 {offsets = [0, 128], sizes = [8, 128], strides = [1, 1]} : vector<8x256xf32> to vector<8x128xf32>
    %cst_5 = arith.constant dense<0xFF800000> : vector<8xf32>
    %11 = vector.multi_reduction <maximumf>, %9, %cst_5 [1] : vector<8x128xf32> to vector<8xf32>
    %12 = vector.shape_cast %11 : vector<8xf32> to vector<8x1xf32>
    %13 = vector.broadcast %12 : vector<8x1xf32> to vector<8x128xf32>
    %14 = arith.subf %9, %13 : vector<8x128xf32>
    %15 = math.exp %14 : vector<8x128xf32>
    %cst_6 = arith.constant dense<0.000000e+00> : vector<8xf32>
    %16 = vector.multi_reduction <add>, %15, %cst_6 [1] : vector<8x128xf32> to vector<8xf32>
    %17 = vector.shape_cast %16 : vector<8xf32> to vector<8x1xf32>
    %18 = tpu.reciprocal %17 {approx = true} : vector<8x1xf32> -> vector<8x1xf32>
    %19 = vector.broadcast %18 : vector<8x1xf32> to vector<8x128xf32>
    %20 = arith.mulf %15, %19 : vector<8x128xf32>
    %c0_7 = arith.constant 0 : index
    %c0_8 = arith.constant 0 : index
    %21 = vector.load %arg1[%c0_7, %c0_8] : memref<8x32xbf16, #tpu.memory_space<vmem>>, vector<8x32xbf16>
    %c0_9 = arith.constant 0 : index
    %c0_10 = arith.constant 0 : index
    %22 = vector.load %arg3[%c0_9, %c0_10] : memref<32x32xbf16, #tpu.memory_space<vmem>>, vector<32x32xbf16>
    %cst_11 = arith.constant dense<0.000000e+00> : vector<8x32xf32>
    %23 = tpu.matmul %21, %22, %cst_11 {dimension_numbers = #tpu.dot_dimension_numbers<[1], [0], [0], [1], [0, 0, 1, 1], [], []>} : vector<8x32xbf16>, vector<32x32xbf16>, vector<8x32xf32> -> vector<8x32xf32>
    %24 = vector.broadcast %2 : vector<1x32xf32> to vector<8x32xf32>
    %25 = arith.addf %23, %24 : vector<8x32xf32>
    %26 = math.tanh %25 : vector<8x32xf32>
    %c0_12 = arith.constant 0 : index
    %c0_13 = arith.constant 0 : index
    %27 = vector.load %arg4[%c0_12, %c0_13] : memref<128x128xf32, #tpu.memory_space<vmem>>, vector<128x128xf32>
    %cst_14 = arith.constant dense<0.000000e+00> : vector<8x128xf32>
    %28 = tpu.matmul %20, %27, %cst_14 {dimension_numbers = #tpu.dot_dimension_numbers<[1], [0], [0], [1], [0, 0, 1, 1], [], []>} : vector<8x128xf32>, vector<128x128xf32>, vector<8x128xf32> -> vector<8x128xf32>
    %29 = arith.addf %10, %28 : vector<8x128xf32>
    %c0_15 = arith.constant 0 : index
    %c0_16 = arith.constant 0 : index
    %30 = vector.load %arg5[%c0_15, %c0_16] : memref<32x128xf32, #tpu.memory_space<vmem>>, vector<32x128xf32>
    %cst_17 = arith.constant dense<0.000000e+00> : vector<8x128xf32>
    %31 = tpu.matmul %26, %30, %cst_17 {dimension_numbers = #tpu.dot_dimension_numbers<[1], [0], [0], [1], [0, 0, 1, 1], [], []>} : vector<8x32xf32>, vector<32x128xf32>, vector<8x128xf32> -> vector<8x128xf32>
    %32 = arith.addf %29, %31 : vector<8x128xf32>
    %33 = vector.broadcast %3 : vector<1x128xf32> to vector<8x128xf32>
    %34 = arith.addf %32, %33 : vector<8x128xf32>
    %cst_18 = arith.constant dense<0xFF800000> : vector<8xf32>
    %35 = vector.multi_reduction <maximumf>, %34, %cst_18 [1] : vector<8x128xf32> to vector<8xf32>
    %36 = vector.shape_cast %35 : vector<8xf32> to vector<8x1xf32>
    %37 = vector.broadcast %36 : vector<8x1xf32> to vector<8x128xf32>
    %38 = arith.subf %34, %37 : vector<8x128xf32>
    %39 = math.exp %38 : vector<8x128xf32>
    %cst_19 = arith.constant dense<0.000000e+00> : vector<8xf32>
    %40 = vector.multi_reduction <add>, %39, %cst_19 [1] : vector<8x128xf32> to vector<8xf32>
    %41 = vector.shape_cast %40 : vector<8xf32> to vector<8x1xf32>
    %42 = tpu.reciprocal %41 {approx = true} : vector<8x1xf32> -> vector<8x1xf32>
    %43 = vector.broadcast %42 : vector<8x1xf32> to vector<8x128xf32>
    %44 = arith.mulf %39, %43 : vector<8x128xf32>
    %c0_20 = arith.constant 0 : index
    %c0_21 = arith.constant 0 : index
    %45 = vector.load %arg7[%c0_20, %c0_21] : memref<8x128xf32, #tpu.memory_space<vmem>>, vector<8x128xf32>
    tpu.vector_store %arg7[%c0_20, %c0_21], %44 {strides = array<i32>} : memref<8x128xf32, #tpu.memory_space<vmem>>, vector<8x128xf32>,
    return
  }
}

</mosaic_0001>

<llo_original>
// kernel: tpu_custom_call.1
$region0: #{tpu_custom_call.1}
  #allocation0 [shape = 'u32[]', space=smem, size = 0x4, offset = 0x4, fixed_abs, tag = 'smem constant byte address 0x4 - core index']
  #allocation1 [shape = 'u32[144,128]{1,0:T(1,128)}', space=vmem, size = 0x12000, scoped, tag = 'internal scratch']
  %s0 = inlined_call_operand.hbm [shape: bf16[8,320], index: 0, kind: input, shape index: {}]
  %s1 = inlined_call_operand.hbm [shape: bf16[8,32], index: 1, kind: input, shape index: {}]
  %s2 = inlined_call_operand.hbm [shape: bf16[320,256], index: 2, kind: input, shape index: {}]
  %s3 = inlined_call_operand.hbm [shape: bf16[32,32], index: 3, kind: input, shape index: {}]
  %s4 = inlined_call_operand.hbm [shape: f32[128,128], index: 4, kind: input, shape index: {}]
  %s5 = inlined_call_operand.hbm [shape: f32[32,128], index: 5, kind: input, shape index: {}]
  %s6 = inlined_call_operand.vmem [shape: f32[3,128], index: 6, kind: input, shape index: {}]
  %s7 = inlined_call_operand.hbm [shape: f32[8,128], index: 7, kind: output, shape index: {}]
  %s8 = sld [smem:[#allocation0]]
  $region62: #{tpu_custom_call.1} parent=0
    _
  %s10 = ssub.s32 1, %s8
  %s11 = scalar_select 0, %s10, %s8
  $region1: #{tpu_custom_call.1} parent=0
    #allocation2 [shape = 'u8[6144]{0}', space=vmem, size = 0x1800, scoped, tag = 'input window, operand 0, single buffered']
    #allocation3 [shape = 's32[1]{0}', space=sflag, size = 0x4, scoped, tag = 'scoped memory for tpu_custom_call.1']
    #allocation4 [shape = 's32[1]{0}', space=sflag, size = 0x4, scoped, tag = 'scoped memory for tpu_custom_call.1']
    #allocation5 [shape = 'u8[2048]{0}', space=vmem, size = 0x800, scoped, tag = 'input window, operand 1, single buffered']
    #allocation6 [shape = 's32[1]{0}', space=sflag, size = 0x4, scoped, tag = 'scoped memory for tpu_custom_call.1']
    #allocation7 [shape = 'u8[163840]{0}', space=vmem, size = 0x28000, scoped, tag = 'input window, operand 2, single buffered']
    #allocation8 [shape = 'u8[8192]{0}', space=vmem, size = 0x2000, scoped, tag = 'input window, operand 3, single buffered']
    #allocation9 [shape = 's32[1]{0}', space=sflag, size = 0x4, scoped, tag = 'scoped memory for tpu_custom_call.1']
    #allocation10 [shape = 'u8[65536]{0}', space=vmem, size = 0x10000, scoped, tag = 'input window, operand 4, single buffered']
    #allocation11 [shape = 'u8[16384]{0}', space=vmem, size = 0x4000, scoped, tag = 'input window, operand 5, single buffered']
    #allocation12 [shape = 's32[1]{0}', space=sflag, size = 0x4, scoped, tag = 'scoped memory for tpu_custom_call.1']
    #allocation13 [shape = 'u8[4096]{0}', space=vmem, size = 0x1000, scoped, tag = 'output window, operand 0, single buffered']
    %12 = vsyncpa [#allocation3], 0
    %13 = vsyncpa [#allocation6], 0
    %14 = vsyncpa [#allocation9], 0
    %15 = vsyncpa [#allocation12], 0
    %16 = vsyncpa [#allocation4], 0
    // Predicated region
    $region2: #{tpu_custom_call.1} parent=1 // pred_check
      _
    $region3: #{tpu_custom_call.1} parent=1 // pred_check_branch
      %18 = sbr.rel (0) target = $region5
    $region4: #{tpu_custom_call.1} parent=1 // pred_region
      %s20 = ssub.s32 192, 192
      %21 = vsyncadd [#allocation3], %s20
      %s23 = sshll.u32 [#allocation2], 4
      %s24 = int_to_ptr.vmem [resolvable:$true] %s23
      %26 = dma.hbm_to_vmem [thread:$0]  %s0, 192, %s24, [#allocation3]
    $region5: #{tpu_custom_call.1} parent=1 // pred_fallthru
      _
    // Predicated region
    $region6: #{tpu_custom_call.1} parent=1 // pred_check
      _
    $region7: #{tpu_custom_call.1} parent=1 // pred_check_branch
      %28 = sbr.rel (0) target = $region9
    $region8: #{tpu_custom_call.1} parent=1 // pred_region
      %s30 = ssub.s32 64, 64
      %31 = vsyncadd [#allocation6], %s30
      %s33 = sshll.u32 [#allocation5], 4
      %s34 = int_to_ptr.vmem [resolvable:$true] %s33
      %36 = dma.hbm_to_vmem [thread:$0]  %s1, 64, %s34, [#allocation6]
    $region9: #{tpu_custom_call.1} parent=1 // pred_fallthru
      _
    // Predicated region
    $region10: #{tpu_custom_call.1} parent=1 // pred_check
      _
    $region11: #{tpu_custom_call.1} parent=1 // pred_check_branch
      %38 = sbr.rel (0) target = $region13
    $region12: #{tpu_custom_call.1} parent=1 // pred_region
      %s40 = ssub.s32 5120, 5120
      %41 = vsyncadd [#allocation6], %s40
      %s42 = sshll.u32 [#allocation7], 4
      %s43 = int_to_ptr.vmem [resolvable:$true] %s42
      %48 = dma.hbm_to_vmem [thread:$0]  %s2, 5120, %s43, [#allocation6], 128, 128, 8
    $region13: #{tpu_custom_call.1} parent=1 // pred_fallthru
      _
    // Predicated region
    $region14: #{tpu_custom_call.1} parent=1 // pred_check
      _
    $region15: #{tpu_custom_call.1} parent=1 // pred_check_branch
      %50 = sbr.rel (0) target = $region17
    $region16: #{tpu_custom_call.1} parent=1 // pred_region
      %s52 = ssub.s32 256, 256
      %53 = vsyncadd [#allocation9], %s52
      %s54 = sshll.u32 [#allocation8], 4
      %s55 = int_to_ptr.vmem [resolvable:$true] %s54
      %60 = dma.hbm_to_vmem [thread:$0]  %s3, 256, %s55, [#allocation9], 64, 64, 4
    $region17: #{tpu_custom_call.1} parent=1 // pred_fallthru
      _
    // Predicated region
    $region18: #{tpu_custom_call.1} parent=1 // pred_check
      _
    $region19: #{tpu_custom_call.1} parent=1 // pred_check_branch
      %62 = sbr.rel (0) target = $region21
    $region20: #{tpu_custom_call.1} parent=1 // pred_region
      %s64 = ssub.s32 2048, 2048
      %65 = vsyncadd [#allocation9], %s64
      %s66 = sshll.u32 [#allocation10], 4
      %s67 = int_to_ptr.vmem [resolvable:$true] %s66
      %72 = dma.hbm_to_vmem [thread:$0]  %s4, 2048, %s67, [#allocation9], 128, 128, 8
    $region21: #{tpu_custom_call.1} parent=1 // pred_fallthru
      _
    // Predicated region
    $region22: #{tpu_custom_call.1} parent=1 // pred_check
      _
    $region23: #{tpu_custom_call.1} parent=1 // pred_check_branch
      %74 = sbr.rel (0) target = $region25
    $region24: #{tpu_custom_call.1} parent=1 // pred_region
      %s76 = ssub.s32 512, 512
      %77 = vsyncadd [#allocation12], %s76
      %s78 = sshll.u32 [#allocation11], 4
      %s79 = int_to_ptr.vmem [resolvable:$true] %s78
      %84 = dma.hbm_to_vmem [thread:$0]  %s5, 512, %s79, [#allocation12], 128, 128, 8
    $region25: #{tpu_custom_call.1} parent=1 // pred_fallthru
      _
    // Predicated region
    $region26: #{tpu_custom_call.1} parent=1 // pred_check
      _
    $region27: #{tpu_custom_call.1} parent=1 // pred_check_branch
      %86 = sbr.rel (0) target = $region29
    $region28: #{tpu_custom_call.1} parent=1 // pred_region
      _
    $region29: #{tpu_custom_call.1} parent=1 // pred_fallthru
      _
    // Predicated region
    $region30: #{tpu_custom_call.1} parent=1 // pred_check
      _
    $region31: #{tpu_custom_call.1} parent=1 // pred_check_branch
      %88 = sbr.rel (0) target = $region33
    $region32: #{tpu_custom_call.1} parent=1 // pred_region
      %89 = dma.done [#allocation3], 192
    $region33: #{tpu_custom_call.1} parent=1 // pred_fallthru
      _
    // Predicated region
    $region34: #{tpu_custom_call.1} parent=1 // pred_check
      _
    $region35: #{tpu_custom_call.1} parent=1 // pred_check_branch
      %91 = sbr.rel (0) target = $region37
    $region36: #{tpu_custom_call.1} parent=1 // pred_region
      %92 = dma.done [#allocation6], 64
    $region37: #{tpu_custom_call.1} parent=1 // pred_fallthru
      _
    // Predicated region
    $region38: #{tpu_custom_call.1} parent=1 // pred_check
      _
    $region39: #{tpu_custom_call.1} parent=1 // pred_check_branch
      %94 = sbr.rel (0) target = $region41
    $region40: #{tpu_custom_call.1} parent=1 // pred_region
      %95 = dma.done [#allocation6], 5120
    $region41: #{tpu_custom_call.1} parent=1 // pred_fallthru
      _
    // Predicated region
    $region42: #{tpu_custom_call.1} parent=1 // pred_check
      _
    $region43: #{tpu_custom_call.1} parent=1 // pred_check_branch
      %97 = sbr.rel (0) target = $region45
    $region44: #{tpu_custom_call.1} parent=1 // pred_region
      %98 = dma.done [#allocation9], 256
    $region45: #{tpu_custom_call.1} parent=1 // pred_fallthru
      _
    // Predicated region
    $region46: #{tpu_custom_call.1} parent=1 // pred_check
      _
    $region47: #{tpu_custom_call.1} parent=1 // pred_check_branch
      %100 = sbr.rel (0) target = $region49
    $region48: #{tpu_custom_call.1} parent=1 // pred_region
      %101 = dma.done [#allocation9], 2048
    $region49: #{tpu_custom_call.1} parent=1 // pred_fallthru
      _
    // Predicated region
    $region50: #{tpu_custom_call.1} parent=1 // pred_check
      _
    $region51: #{tpu_custom_call.1} parent=1 // pred_check_branch
      %103 = sbr.rel (0) target = $region53
    $region52: #{tpu_custom_call.1} parent=1 // pred_region
      %104 = dma.done [#allocation12], 512
    $region53: #{tpu_custom_call.1} parent=1 // pred_fallthru
      _
    %v106 = vld [vmem:[%s6] sm:$0x7]
    %v107 = vld [vmem:[#allocation2] sm:$0xff]
    %v108 = vld [vmem:[#allocation2 + $0x8] sm:$0xf]
    %v109 = vld [vmem:[#allocation7] sm:$0xff]
    %v110 = vld [vmem:[#allocation7 + $0x8] sm:$0xff]
    %v111 = vld [vmem:[#allocation7 + $0x10] sm:$0xff]
    %v112 = vld [vmem:[#allocation7 + $0x18] sm:$0xff]
    %v113 = vld [vmem:[#allocation7 + $0x20] sm:$0xff]
    %v114 = vld [vmem:[#allocation7 + $0x28] sm:$0xff]
    %v115 = vld [vmem:[#allocation7 + $0x30] sm:$0xff]
    %v116 = vld [vmem:[#allocation7 + $0x38] sm:$0xff]
    %v117 = vld [vmem:[#allocation7 + $0x40] sm:$0xff]
    %v118 = vld [vmem:[#allocation7 + $0x48] sm:$0xff]
    %v119 = vld [vmem:[#allocation7 + $0x50] sm:$0xff]
    %v120 = vld [vmem:[#allocation7 + $0x58] sm:$0xff]
    %v121 = vld [vmem:[#allocation7 + $0x60] sm:$0xff]
    %v122 = vld [vmem:[#allocation7 + $0x68] sm:$0xff]
    %v123 = vld [vmem:[#allocation7 + $0x70] sm:$0xff]
    %v124 = vld [vmem:[#allocation7 + $0x78] sm:$0xff]
    %v125 = vld [vmem:[#allocation7 + $0x80] sm:$0xff]
    %v126 = vld [vmem:[#allocation7 + $0x88] sm:$0xff]
    %v127 = vld [vmem:[#allocation7 + $0x90] sm:$0xff]
    %v128 = vld [vmem:[#allocation7 + $0x98] sm:$0xff]
    %v129 = vld [vmem:[#allocation7 + $0xa0] sm:$0xff]
    %v130 = vld [vmem:[#allocation7 + $0xa8] sm:$0xff]
    %v131 = vld [vmem:[#allocation7 + $0xb0] sm:$0xff]
    %v132 = vld [vmem:[#allocation7 + $0xb8] sm:$0xff]
    %v133 = vld [vmem:[#allocation7 + $0xc0] sm:$0xff]
    %v134 = vld [vmem:[#allocation7 + $0xc8] sm:$0xff]
    %v135 = vld [vmem:[#allocation7 + $0xd0] sm:$0xff]
    %v136 = vld [vmem:[#allocation7 + $0xd8] sm:$0xff]
    %v137 = vld [vmem:[#allocation7 + $0xe0] sm:$0xff]
    %v138 = vld [vmem:[#allocation7 + $0xe8] sm:$0xff]
    %v139 = vld [vmem:[#allocation7 + $0xf0] sm:$0xff]
    %v140 = vld [vmem:[#allocation7 + $0xf8] sm:$0xff]
    %v141 = vld [vmem:[#allocation7 + $0x100] sm:$0xff]
    %v142 = vld [vmem:[#allocation7 + $0x108] sm:$0xff]
    %v143 = vld [vmem:[#allocation7 + $0x110] sm:$0xff]
    %v144 = vld [vmem:[#allocation7 + $0x118] sm:$0xff]
    %v145 = vld [vmem:[#allocation7 + $0x120] sm:$0xff]
    %v146 = vld [vmem:[#allocation7 + $0x128] sm:$0xff]
    %v147 = vld [vmem:[#allocation7 + $0x130] sm:$0xff]
    %v148 = vld [vmem:[#allocation7 + $0x138] sm:$0xff]
    %v151 = vunpack.c.l.b16 %v107
    %v152 = vunpack.c.h.b16 %v107
    %v153 = vunpack.c.l.b16 %v108
    %v154 = vpack.c.b16 %v151, %v151
    %v155 = vpack.c.b16 %v152, %v152
    %v156 = vpack.c.b16 %v153, %v153
    %v199 = vunpack.c.l.b16 %v109
    %v200 = vunpack.c.h.b16 %v109
    %v201 = vunpack.c.l.b16 %v110
    %v202 = vunpack.c.h.b16 %v110
    %v203 = vunpack.c.l.b16 %v111
    %v204 = vunpack.c.h.b16 %v111
    %v205 = vunpack.c.l.b16 %v112
    %v206 = vunpack.c.h.b16 %v112
    %v207 = vunpack.c.l.b16 %v113
    %v208 = vunpack.c.h.b16 %v113
    %v209 = vunpack.c.l.b16 %v114
    %v210 = vunpack.c.h.b16 %v114
    %v211 = vunpack.c.l.b16 %v115
    %v212 = vunpack.c.h.b16 %v115
    %v213 = vunpack.c.l.b16 %v116
    %v214 = vunpack.c.h.b16 %v116
    %v215 = vunpack.c.l.b16 %v117
    %v216 = vunpack.c.h.b16 %v117
    %v217 = vunpack.c.l.b16 %v118
    %v218 = vunpack.c.h.b16 %v118
    %v219 = vunpack.c.l.b16 %v119
    %v220 = vunpack.c.h.b16 %v119
    %v221 = vunpack.c.l.b16 %v120
    %v222 = vunpack.c.h.b16 %v120
    %v223 = vunpack.c.l.b16 %v121
    %v224 = vunpack.c.h.b16 %v121
    %v225 = vunpack.c.l.b16 %v122
    %v226 = vunpack.c.h.b16 %v122
    %v227 = vunpack.c.l.b16 %v123
    %v228 = vunpack.c.h.b16 %v123
    %v229 = vunpack.c.l.b16 %v124
    %v230 = vunpack.c.h.b16 %v124
    %v231 = vunpack.c.l.b16 %v125
    %v232 = vunpack.c.h.b16 %v125
    %v233 = vunpack.c.l.b16 %v126
    %v234 = vunpack.c.h.b16 %v126
    %v235 = vunpack.c.l.b16 %v127
    %v236 = vunpack.c.h.b16 %v127
    %v237 = vunpack.c.l.b16 %v128
    %v238 = vunpack.c.h.b16 %v128
    %v239 = vunpack.c.l.b16 %v129
    %v240 = vunpack.c.h.b16 %v129
    %v241 = vunpack.c.l.b16 %v130
    %v242 = vunpack.c.h.b16 %v130
    %v243 = vunpack.c.l.b16 %v131
    %v244 = vunpack.c.h.b16 %v131
    %v245 = vunpack.c.l.b16 %v132
    %v246 = vunpack.c.h.b16 %v132
    %v247 = vunpack.c.l.b16 %v133
    %v248 = vunpack.c.h.b16 %v133
    %v249 = vunpack.c.l.b16 %v134
    %v250 = vunpack.c.h.b16 %v134
    %v251 = vunpack.c.l.b16 %v135
    %v252 = vunpack.c.h.b16 %v135
    %v253 = vunpack.c.l.b16 %v136
    %v254 = vunpack.c.h.b16 %v136
    %v255 = vunpack.c.l.b16 %v137
    %v256 = vunpack.c.h.b16 %v137
    %v257 = vunpack.c.l.b16 %v138
    %v258 = vunpack.c.h.b16 %v138
    %v259 = vunpack.c.l.b16 %v139
    %v260 = vunpack.c.h.b16 %v139
    %v261 = vunpack.c.l.b16 %v140
    %v262 = vunpack.c.h.b16 %v140
    %v263 = vunpack.c.l.b16 %v141
    %v264 = vunpack.c.h.b16 %v141
    %v265 = vunpack.c.l.b16 %v142
    %v266 = vunpack.c.h.b16 %v142
    %v267 = vunpack.c.l.b16 %v143
    %v268 = vunpack.c.h.b16 %v143
    %v269 = vunpack.c.l.b16 %v144
    %v270 = vunpack.c.h.b16 %v144
    %v271 = vunpack.c.l.b16 %v145
    %v272 = vunpack.c.h.b16 %v145
    %v273 = vunpack.c.l.b16 %v146
    %v274 = vunpack.c.h.b16 %v146
    %v275 = vunpack.c.l.b16 %v147
    %v276 = vunpack.c.h.b16 %v147
    %v277 = vunpack.c.l.b16 %v148
    %v278 = vunpack.c.h.b16 %v148
    %v279 = vpack.c.b16 %v201, %v199
    %v280 = vpack.c.b16 %v202, %v200
    %v281 = vpack.c.b16 %v205, %v203
    %v282 = vpack.c.b16 %v206, %v204
    %v283 = vpack.c.b16 %v209, %v207
    %v284 = vpack.c.b16 %v210, %v208
    %v285 = vpack.c.b16 %v213, %v211
    %v286 = vpack.c.b16 %v214, %v212
    %v287 = vpack.c.b16 %v217, %v215
    %v288 = vpack.c.b16 %v218, %v216
    %v289 = vpack.c.b16 %v221, %v219
    %v290 = vpack.c.b16 %v222, %v220
    %v291 = vpack.c.b16 %v225, %v223
    %v292 = vpack.c.b16 %v226, %v224
    %v293 = vpack.c.b16 %v229, %v227
    %v294 = vpack.c.b16 %v230, %v228
    %v295 = vpack.c.b16 %v233, %v231
    %v296 = vpack.c.b16 %v234, %v232
    %v297 = vpack.c.b16 %v237, %v235
    %v298 = vpack.c.b16 %v238, %v236
    %v299 = vpack.c.b16 %v241, %v239
    %v300 = vpack.c.b16 %v242, %v240
    %v301 = vpack.c.b16 %v245, %v243
    %v302 = vpack.c.b16 %v246, %v244
    %v303 = vpack.c.b16 %v249, %v247
    %v304 = vpack.c.b16 %v250, %v248
    %v305 = vpack.c.b16 %v253, %v251
    %v306 = vpack.c.b16 %v254, %v252
    %v307 = vpack.c.b16 %v257, %v255
    %v308 = vpack.c.b16 %v258, %v256
    %v309 = vpack.c.b16 %v261, %v259
    %v310 = vpack.c.b16 %v262, %v260
    %v311 = vpack.c.b16 %v265, %v263
    %v312 = vpack.c.b16 %v266, %v264
    %v313 = vpack.c.b16 %v269, %v267
    %v314 = vpack.c.b16 %v270, %v268
    %v315 = vpack.c.b16 %v273, %v271
    %v316 = vpack.c.b16 %v274, %v272
    %v317 = vpack.c.b16 %v277, %v275
    %v318 = vpack.c.b16 %v278, %v276
    %vm359 = vcmask 523264
    %v361 = vsel %vm359, %v156, 0
    %363 = vmatprep.subr.bf16.mxu0 %v280
    %364 = vmatpush1.bf16.msra.mxu0 %v279
    %365 = vmatprep.subr.bf16.mxu0 %v282
    %366 = vmatpush1.bf16.msra.mxu0 %v281
    %367 = vmatprep.subr.bf16.mxu0 %v284
    %368 = vmatpush1.bf16.msra.mxu0 %v283
    %369 = vmatprep.subr.bf16.mxu0 %v286
    %370 = vmatpush1.bf16.msra.mxu0 %v285
    %371 = vmatprep.subr.bf16.mxu0 %v288
    %372 = vmatpush1.bf16.msra.mxu0 %v287
    %373 = vmatprep.subr.bf16.mxu0 %v290
    %374 = vmatpush1.bf16.msra.mxu0 %v289
    %375 = vmatprep.subr.bf16.mxu0 %v292
    %376 = vmatpush1.bf16.msra.mxu0 %v291
    %377 = vmatprep.subr.bf16.mxu0 %v294
    %378 = vmatpush1.bf16.msra.mxu0 %v293
    %379 = vmatprep.subr.bf16.mxu0 %v296
    %380 = vmatpush1.bf16.msra.mxu0 %v295
    %381 = vmatprep.subr.bf16.mxu0 %v298
    %382 = vmatpush1.bf16.msra.mxu0 %v297
    %383 = vmatprep.subr.bf16.mxu0 %v300
    %384 = vmatpush1.bf16.msra.mxu0 %v299
    %385 = vmatprep.subr.bf16.mxu0 %v302
    %386 = vmatpush1.bf16.msra.mxu0 %v301
    %387 = vmatprep.subr.bf16.mxu0 %v304
    %388 = vmatpush1.bf16.msra.mxu0 %v303
    %389 = vmatprep.subr.bf16.mxu0 %v306
    %390 = vmatpush1.bf16.msra.mxu0 %v305
    %391 = vmatprep.subr.bf16.mxu0 %v308
    %392 = vmatpush1.bf16.msra.mxu0 %v307
    %393 = vmatprep.subr.bf16.mxu0 %v310
    %394 = vmatpush1.bf16.msra.mxu0 %v309
    %395 = vmatprep.mubr.bf16.mxu0 %v155
    %396 = vmatmul.mubr.bf16.gmra.mrb[0].mxu0 %v154
    %v397 = vpop.f32.mrb[0].mxu0
    %v398 = vadd.f32 0.0, %v397
    %v399 = vpop.f32.mrb[0].mxu0
    %v400 = vadd.f32 0.0, %v399
    %v401 = vpop.f32.mrb[0].mxu0
    %v402 = vpop.f32.mrb[0].mxu0
    %403 = vdwg.mxu0
    %404 = vmatprep.subr.bf16.mxu0 %v312
    %405 = vmatpush1.bf16.msra.mxu0 %v311
    %406 = vmatprep.subr.bf16.mxu0 %v314
    %407 = vmatpush1.bf16.msra.mxu0 %v313
    %408 = vmatprep.subr.bf16.mxu0 %v316
    %409 = vmatpush1.bf16.msra.mxu0 %v315
    %410 = vmatprep.subr.bf16.mxu0 %v318
    %411 = vmatpush1.bf16.msra.mxu0 %v317
    %412 = vmatprep.subr.bf16.mxu0 0
    %413 = vmatpush1.bf16.msra.mxu0 0
    %414 = vmatprep.subr.bf16.mxu0 0
    %415 = vmatpush1.bf16.msra.mxu0 0
    %416 = vmatprep.subr.bf16.mxu0 0
    %417 = vmatpush1.bf16.msra.mxu0 0
    %418 = vmatprep.subr.bf16.mxu0 0
    %419 = vmatpush1.bf16.msra.mxu0 0
    %420 = vmatprep.subr.bf16.mxu0 0
    %421 = vmatpush1.bf16.msra.mxu0 0
    %422 = vmatprep.subr.bf16.mxu0 0
    %423 = vmatpush1.bf16.msra.mxu0 0
    %424 = vmatprep.subr.bf16.mxu0 0
    %425 = vmatpush1.bf16.msra.mxu0 0
    %426 = vmatprep.subr.bf16.mxu0 0
    %427 = vmatpush1.bf16.msra.mxu0 0
    %428 = vmatprep.subr.bf16.mxu0 0
    %429 = vmatpush1.bf16.msra.mxu0 0
    %430 = vmatprep.subr.bf16.mxu0 0
    %431 = vmatpush1.bf16.msra.mxu0 0
    %432 = vmatprep.subr.bf16.mxu0 0
    %433 = vmatpush1.bf16.msra.mxu0 0
    %434 = vmatprep.subr.bf16.mxu0 0
    %435 = vmatpush1.bf16.msra.mxu0 0
    %436 = vmatprep.mubr.bf16.mxu0 0
    %437 = vmatmul.mubr.bf16.gmra.mrb[0].mxu0 %v361
    %v438 = vpop.f32.mrb[0].mxu0
    %v439 = vadd.f32 %v398, %v438
    %v440 = vpop.f32.mrb[0].mxu0
    %v441 = vadd.f32 %v400, %v440
    %v442 = vpop.f32.mrb[0].mxu0
    %v443 = vpop.f32.mrb[0].mxu0
    %444 = vdwg.mxu0
    %v445 = vlaneseq
    %v446 = vshrl.u32 %v445, 7
    %v447 = vsub.s32 0, %v446
    %v448 = vrot.slane %v106, %v447
    %v449 = vadd.f32 %v439, %v448
    %450 = vmax.xlane.f32.xlu0 %v449
    %v451 = vpop.xlane.xlu0 %450
    %v452 = vsub.f32 %v449, %v451
    %v453 = vmul.f32 %v452, 1.442695
    %v454 = vpow.pop %v453
    %455 = vadd.xlane.f32.xlu0 %v454
    %v456 = vpop.xlane.xlu0 %455
    %v457 = vrcp.pop %v456
    %v458 = vmul.f32 %v454, %v457
    %v459 = vld [vmem:[#allocation5] sm:$0xf]
    %v460 = vld [vmem:[#allocation8] sm:$0xf]
    %v461 = vld [vmem:[#allocation8 + $0x4] sm:$0xf]
    %v462 = vld [vmem:[#allocation8 + $0x8] sm:$0xf]
    %v463 = vld [vmem:[#allocation8 + $0xc] sm:$0xf]
    %v464 = vlaneseq
    %v465 = vshrl.u32 %v464, 7
    %v466 = vsub.s32 1, %v465
    %v467 = vrot.slane %v106, %v466
    %v472 = vunpack.c.l.b16 %v460
    %v473 = vunpack.c.l.b16 %v461
    %v474 = vunpack.c.l.b16 %v462
    %v475 = vunpack.c.l.b16 %v463
    %v476 = vpack.c.b16 %v473, %v472
    %v477 = vpack.c.b16 %v475, %v474
    %vm480 = vcmask 261120
    %v482 = vsel %vm480, %v459, 0
    %484 = vmatprep.subr.bf16.mxu0 0
    %485 = vmatpush1.bf16.msra.mxu0 %v476
    %486 = vmatprep.subr.bf16.mxu0 0
    %487 = vmatpush1.bf16.msra.mxu0 %v477
    %488 = vmatprep.subr.bf16.mxu0 0
    %489 = vmatpush1.bf16.msra.mxu0 0
    %490 = vmatprep.subr.bf16.mxu0 0
    %491 = vmatpush1.bf16.msra.mxu0 0
    %492 = vmatprep.subr.bf16.mxu0 0
    %493 = vmatpush1.bf16.msra.mxu0 0
    %494 = vmatprep.subr.bf16.mxu0 0
    %495 = vmatpush1.bf16.msra.mxu0 0
    %496 = vmatprep.subr.bf16.mxu0 0
    %497 = vmatpush1.bf16.msra.mxu0 0
    %498 = vmatprep.subr.bf16.mxu0 0
    %499 = vmatpush1.bf16.msra.mxu0 0
    %500 = vmatprep.subr.bf16.mxu0 0
    %501 = vmatpush1.bf16.msra.mxu0 0
    %502 = vmatprep.subr.bf16.mxu0 0
    %503 = vmatpush1.bf16.msra.mxu0 0
    %504 = vmatprep.subr.bf16.mxu0 0
    %505 = vmatpush1.bf16.msra.mxu0 0
    %506 = vmatprep.subr.bf16.mxu0 0
    %507 = vmatpush1.bf16.msra.mxu0 0
    %508 = vmatprep.subr.bf16.mxu0 0
    %509 = vmatpush1.bf16.msra.mxu0 0
    %510 = vmatprep.subr.bf16.mxu0 0
    %511 = vmatpush1.bf16.msra.mxu0 0
    %512 = vmatprep.subr.bf16.mxu0 0
    %513 = vmatpush1.bf16.msra.mxu0 0
    %514 = vmatprep.subr.bf16.mxu0 0
    %515 = vmatpush1.bf16.msra.mxu0 0
    %516 = vmatprep.mubr.bf16.mxu0 0
    %517 = vmatmul.mubr.bf16.gmra.mrb[0].mxu0 %v482
    %v518 = vpop.f32.mrb[0].mxu0
    %v519 = vadd.f32 %v467, %v518
    %v520 = vpop.f32.mrb[0].mxu0
    %v521 = vpop.f32.mrb[0].mxu0
    %v522 = vpop.f32.mrb[0].mxu0
    %523 = vdwg.mxu0
    %v524 = vtanh.pop %v519
    %v525 = vld [vmem:[#allocation10] sm:$0xff]
    %v526 = vld [vmem:[#allocation10 + $0x8] sm:$0xff]
    %v527 = vld [vmem:[#allocation10 + $0x10] sm:$0xff]
    %v528 = vld [vmem:[#allocation10 + $0x18] sm:$0xff]
    %v529 = vld [vmem:[#allocation10 + $0x20] sm:$0xff]
    %v530 = vld [vmem:[#allocation10 + $0x28] sm:$0xff]
    %v531 = vld [vmem:[#allocation10 + $0x30] sm:$0xff]
    %v532 = vld [vmem:[#allocation10 + $0x38] sm:$0xff]
    %v533 = vld [vmem:[#allocation10 + $0x40] sm:$0xff]
    %v534 = vld [vmem:[#allocation10 + $0x48] sm:$0xff]
    %v535 = vld [vmem:[#allocation10 + $0x50] sm:$0xff]
    %v536 = vld [vmem:[#allocation10 + $0x58] sm:$0xff]
    %v537 = vld [vmem:[#allocation10 + $0x60] sm:$0xff]
    %v538 = vld [vmem:[#allocation10 + $0x68] sm:$0xff]
    %v539 = vld [vmem:[#allocation10 + $0x70] sm:$0xff]
    %v540 = vld [vmem:[#allocation10 + $0x78] sm:$0xff]
    %541 = vmatprep.subr.mxu0 0.0
    %542 = vmatpush1.msra.mxu0 %v525
    %543 = vmatprep.subr.mxu0 0.0
    %544 = vmatpush1.msra.mxu0 %v526
    %545 = vmatprep.subr.mxu0 0.0
    %546 = vmatpush1.msra.mxu0 %v527
    %547 = vmatprep.subr.mxu0 0.0
    %548 = vmatpush1.msra.mxu0 %v528
    %549 = vmatprep.subr.mxu0 0.0
    %550 = vmatpush1.msra.mxu0 %v529
    %551 = vmatprep.subr.mxu0 0.0
    %552 = vmatpush1.msra.mxu0 %v530
    %553 = vmatprep.subr.mxu0 0.0
    %554 = vmatpush1.msra.mxu0 %v531
    %555 = vmatprep.subr.mxu0 0.0
    %556 = vmatpush1.msra.mxu0 %v532
    %557 = vmatprep.subr.mxu0 0.0
    %558 = vmatpush1.msra.mxu0 %v533
    %559 = vmatprep.subr.mxu0 0.0
    %560 = vmatpush1.msra.mxu0 %v534
    %561 = vmatprep.subr.mxu0 0.0
    %562 = vmatpush1.msra.mxu0 %v535
    %563 = vmatprep.subr.mxu0 0.0
    %564 = vmatpush1.msra.mxu0 %v536
    %565 = vmatprep.subr.mxu0 0.0
    %566 = vmatpush1.msra.mxu0 %v537
    %567 = vmatprep.subr.mxu0 0.0
    %568 = vmatpush1.msra.mxu0 %v538
    %569 = vmatprep.subr.mxu0 0.0
    %570 = vmatpush1.msra.mxu0 %v539
    %571 = vmatprep.subr.mxu0 0.0
    %572 = vmatpush1.msra.mxu0 %v540
    %573 = vmatprep.subr.mxu0 0.0
    %574 = vmatpush1.msra.mxu0 0.0
    %575 = vmatprep.subr.mxu0 0.0
    %576 = vmatpush1.msra.mxu0 0.0
    %577 = vmatprep.subr.mxu0 0.0
    %578 = vmatpush1.msra.mxu0 0.0
    %579 = vmatprep.subr.mxu0 0.0
    %580 = vmatpush1.msra.mxu0 0.0
    %581 = vmatprep.subr.mxu0 0.0
    %582 = vmatpush1.msra.mxu0 0.0
    %583 = vmatprep.subr.mxu0 0.0
    %584 = vmatpush1.msra.mxu0 0.0
    %585 = vmatprep.subr.mxu0 0.0
    %586 = vmatpush1.msra.mxu0 0.0
    %587 = vmatprep.subr.mxu0 0.0
    %588 = vmatpush1.msra.mxu0 0.0
    %589 = vmatprep.subr.mxu0 0.0
    %590 = vmatpush1.msra.mxu0 0.0
    %591 = vmatprep.subr.mxu0 0.0
    %592 = vmatpush1.msra.mxu0 0.0
    %593 = vmatprep.subr.mxu0 0.0
    %594 = vmatpush1.msra.mxu0 0.0
    %595 = vmatprep.subr.mxu0 0.0
    %596 = vmatpush1.msra.mxu0 0.0
    %597 = vmatprep.subr.mxu0 0.0
    %598 = vmatpush1.msra.mxu0 0.0
    %599 = vmatprep.subr.mxu0 0.0
    %600 = vmatpush1.msra.mxu0 0.0
    %601 = vmatprep.subr.mxu0 0.0
    %602 = vmatpush1.msra.mxu0 0.0
    %603 = vmatprep.subr.mxu0 0.0
    %604 = vmatpush1.msra.mxu0 0.0
    %605 = vmatprep.mubr.f32.mxu0 0.0
    %606 = vmatmul.mubr.f32.gmra.mrb[0].mxu0 %v458
    %v607 = vpop.f32.mrb[0].mxu0
    %v608 = vadd.f32 0.0, %v607
    %v609 = vpop.f32.mrb[0].mxu0
    %610 = vdwg.mxu0
    %v611 = vadd.f32 %v441, %v608
    %v612 = vld [vmem:[#allocation11] sm:$0xff]
    %v613 = vld [vmem:[#allocation11 + $0x8] sm:$0xff]
    %v614 = vld [vmem:[#allocation11 + $0x10] sm:$0xff]
    %v615 = vld [vmem:[#allocation11 + $0x18] sm:$0xff]
    %v617 = vsel %vm480, %v524, 0
    %619 = vmatprep.subr.mxu0 0.0
    %620 = vmatpush1.msra.mxu0 %v612
    %621 = vmatprep.subr.mxu0 0.0
    %622 = vmatpush1.msra.mxu0 %v613
    %623 = vmatprep.subr.mxu0 0.0
    %624 = vmatpush1.msra.mxu0 %v614
    %625 = vmatprep.subr.mxu0 0.0
    %626 = vmatpush1.msra.mxu0 %v615
    %627 = vmatprep.subr.mxu0 0.0
    %628 = vmatpush1.msra.mxu0 0.0
    %629 = vmatprep.subr.mxu0 0.0
    %630 = vmatpush1.msra.mxu0 0.0
    %631 = vmatprep.subr.mxu0 0.0
    %632 = vmatpush1.msra.mxu0 0.0
    %633 = vmatprep.subr.mxu0 0.0
    %634 = vmatpush1.msra.mxu0 0.0
    %635 = vmatprep.subr.mxu0 0.0
    %636 = vmatpush1.msra.mxu0 0.0
    %637 = vmatprep.subr.mxu0 0.0
    %638 = vmatpush1.msra.mxu0 0.0
    %639 = vmatprep.subr.mxu0 0.0
    %640 = vmatpush1.msra.mxu0 0.0
    %641 = vmatprep.subr.mxu0 0.0
    %642 = vmatpush1.msra.mxu0 0.0
    %643 = vmatprep.subr.mxu0 0.0
    %644 = vmatpush1.msra.mxu0 0.0
    %645 = vmatprep.subr.mxu0 0.0
    %646 = vmatpush1.msra.mxu0 0.0
    %647 = vmatprep.subr.mxu0 0.0
    %648 = vmatpush1.msra.mxu0 0.0
    %649 = vmatprep.subr.mxu0 0.0
    %650 = vmatpush1.msra.mxu0 0.0
    %651 = vmatprep.subr.mxu0 0.0
    %652 = vmatpush1.msra.mxu0 0.0
    %653 = vmatprep.subr.mxu0 0.0
    %654 = vmatpush1.msra.mxu0 0.0
    %655 = vmatprep.subr.mxu0 0.0
    %656 = vmatpush1.msra.mxu0 0.0
    %657 = vmatprep.subr.mxu0 0.0
    %658 = vmatpush1.msra.mxu0 0.0
    %659 = vmatprep.subr.mxu0 0.0
    %660 = vmatpush1.msra.mxu0 0.0
    %661 = vmatprep.subr.mxu0 0.0
    %662 = vmatpush1.msra.mxu0 0.0
    %663 = vmatprep.subr.mxu0 0.0
    %664 = vmatpush1.msra.mxu0 0.0
    %665 = vmatprep.subr.mxu0 0.0
    %666 = vmatpush1.msra.mxu0 0.0
    %667 = vmatprep.subr.mxu0 0.0
    %668 = vmatpush1.msra.mxu0 0.0
    %669 = vmatprep.subr.mxu0 0.0
    %670 = vmatpush1.msra.mxu0 0.0
    %671 = vmatprep.subr.mxu0 0.0
    %672 = vmatpush1.msra.mxu0 0.0
    %673 = vmatprep.subr.mxu0 0.0
    %674 = vmatpush1.msra.mxu0 0.0
    %675 = vmatprep.subr.mxu0 0.0
    %676 = vmatpush1.msra.mxu0 0.0
    %677 = vmatprep.subr.mxu0 0.0
    %678 = vmatpush1.msra.mxu0 0.0
    %679 = vmatprep.subr.mxu0 0.0
    %680 = vmatpush1.msra.mxu0 0.0
    %681 = vmatprep.subr.mxu0 0.0
    %682 = vmatpush1.msra.mxu0 0.0
    %683 = vmatprep.mubr.f32.mxu0 0.0
    %684 = vmatmul.mubr.f32.gmra.mrb[0].mxu0 %v617
    %v685 = vpop.f32.mrb[0].mxu0
    %v686 = vadd.f32 0.0, %v685
    %v687 = vpop.f32.mrb[0].mxu0
    %688 = vdwg.mxu0
    %v689 = vadd.f32 %v611, %v686
    %v690 = vlaneseq
    %v691 = vshrl.u32 %v690, 7
    %v692 = vsub.s32 2, %v691
    %v693 = vrot.slane %v106, %v692
    %v694 = vadd.f32 %v689, %v693
    %695 = vmax.xlane.f32.xlu0 %v694
    %v696 = vpop.xlane.xlu0 %695
    %v697 = vsub.f32 %v694, %v696
    %v698 = vmul.f32 %v697, 1.442695
    %v699 = vpow.pop %v698
    %700 = vadd.xlane.f32.xlu0 %v699
    %v701 = vpop.xlane.xlu0 %700
    %v702 = vrcp.pop %v701
    %v703 = vmul.f32 %v699, %v702
    %704 = vst [vmem:[#allocation13] sm:$0xff] %v703
    // Predicated region
    $region54: #{tpu_custom_call.1} parent=1 // pred_check
      _
    $region55: #{tpu_custom_call.1} parent=1 // pred_check_branch
      %706 = sbr.rel (0) target = $region57
    $region56: #{tpu_custom_call.1} parent=1 // pred_region
      %s708 = ssub.s32 128, 128
      %709 = vsyncadd [#allocation4], %s708
      %s711 = sshll.u32 [#allocation13], 4
      %s712 = int_to_ptr.vmem [resolvable:$true] %s711
      %714 = dma.vmem_to_hbm [thread:$0]  %s712, 128, %s7, [#allocation4]
    $region57: #{tpu_custom_call.1} parent=1 // pred_fallthru
      _
    // Predicated region
    $region58: #{tpu_custom_call.1} parent=1 // pred_check
      _
    $region59: #{tpu_custom_call.1} parent=1 // pred_check_branch
      %716 = sbr.rel (0) target = $region61
    $region60: #{tpu_custom_call.1} parent=1 // pred_region
      %717 = dma.done [#allocation4], 128
    $region61: #{tpu_custom_call.1} parent=1 // pred_fallthru
      _
    %718 = vsyncpa [#allocation3], 1
    %719 = vsyncpa [#allocation6], 1
    %720 = vsyncpa [#allocation9], 1
    %721 = vsyncpa [#allocation12], 1
    %722 = vsyncpa [#allocation4], 1

</llo_original>
